<compile_context>
chip_gen: v5e
topology: v5e:2x2
jax: 0.10.0
libtpu: 0.0.40
codegen_flags: <defaults>
</compile_context>

<pallas_src>
import numpy as np

import jax
import jax.numpy as jnp
from jax.experimental import pallas as pl
from jax.experimental.pallas import tpu as pltpu


LANES = 128
TILE_ROWS = 512                    # 512x128 f32 tile = 256 KiB; multiple of 16 -> bf16-safe
TILE_ELEMS = TILE_ROWS * LANES     # elements consumed per grid step
ACC_ROWS = 8                       # per-tensor accumulator = one (8,128) f32 vreg


def _fused_sumsq_kernel(tid_ref, first_ref, x_ref, o_ref):
    """Grid over row-tiles of the fused weight slab.

    Each grid step owns one (TILE_ROWS, 128) tile belonging to exactly one
    weight tensor (tensors are tile-aligned in the slab).  The tile's sum of
    squares is accumulated, lane/sublane-parallel, into that tensor's (8, 128)
    output block.  The output block index is data-dependent (scalar prefetch),
    so consecutive tiles of the same tensor keep their accumulator in VMEM.
    """
    j = pl.program_id(0)

    # First tile of this tensor -> zero its accumulator block.
    @pl.when(first_ref[j] == 1)
    def _():
        o_ref[...] = jnp.zeros_like(o_ref)

    # Pure VPU accumulation: one vreg-sized chunk at a time, cast in-kernel.
    acc = jnp.zeros((ACC_ROWS, LANES), jnp.float32)
    for k in range(TILE_ROWS // ACC_ROWS):           # static slices: zero-cost views
        chunk = x_ref[k * ACC_ROWS:(k + 1) * ACC_ROWS, :].astype(jnp.float32)
        acc = acc + chunk * chunk
    o_ref[...] += acc


def fused_sum_of_squares(weights):
    """One pallas_call returning per-tensor sum(w**2) as a float32 vector."""
    num_tensors = len(weights)
    common_dtype = jnp.result_type(*[w.dtype for w in weights])

    flats = []
    tiles_per_tensor = []
    total_elems = 0
    for w in weights:
        flat = jnp.ravel(w).astype(common_dtype)     # native dtype preserved (no f32 upcast)
        n = flat.shape[0]
        total_elems += n
        n_tiles = max(1, pl.cdiv(n, TILE_ELEMS))
        pad = n_tiles * TILE_ELEMS - n
        flats.append(jnp.pad(flat, (0, pad)))        # zero pad: exact for sum of squares
        tiles_per_tensor.append(int(n_tiles))

    total_tiles = sum(tiles_per_tensor)
    slab = jnp.concatenate(flats).reshape(total_tiles * TILE_ROWS, LANES)

    # Host-side (static) tile -> tensor bookkeeping, scalar-prefetched into SMEM.
    tile_tensor_id = np.repeat(np.arange(num_tensors, dtype=np.int32),
                               np.asarray(tiles_per_tensor, dtype=np.int32))
    tile_is_first = np.zeros(total_tiles, dtype=np.int32)
    tile_is_first[np.cumsum([0] + tiles_per_tensor[:-1])] = 1
    tile_tensor_id = jnp.asarray(tile_tensor_id)
    tile_is_first = jnp.asarray(tile_is_first)

    slab_bytes = total_tiles * TILE_ELEMS * jnp.dtype(common_dtype).itemsize
    cost = pl.CostEstimate(
        flops=2 * total_tiles * TILE_ELEMS,           # mul + add per slab element
        transcendentals=0,                            # sqrt done in JAX glue
        bytes_accessed=int(slab_bytes) + num_tensors * ACC_ROWS * LANES * 4,
    )

    out = pl.pallas_call(
        _fused_sumsq_kernel,
        out_shape=jax.ShapeDtypeStruct((num_tensors * ACC_ROWS, LANES), jnp.float32),
        grid_spec=pltpu.PrefetchScalarGridSpec(
            num_scalar_prefetch=2,
            grid=(total_tiles,),
            in_specs=[pl.BlockSpec((TILE_ROWS, LANES),
                                   lambda j, tid, first: (j, 0))],
            out_specs=pl.BlockSpec((ACC_ROWS, LANES),
                                   lambda j, tid, first: (tid[j], 0)),
        ),
        compiler_params=pltpu.CompilerParams(
            # Sequential reduction axis with data-dependent output revisits.
            # TODO(synk): on v7x, split the row range over the 2 TensorCores with a
            # leading "parallel" axis and per-core partial outputs.
            dimension_semantics=("arbitrary",),
        ),
        cost_estimate=cost,
    )(tile_tensor_id, tile_is_first, slab)

    # Single cheap cross-lane/sublane reduction per tensor, outside the kernel.
    return out.reshape(num_tensors, ACC_ROWS * LANES).sum(axis=1)   # (num_tensors,)


def regularization_forward(named_params, weight_decay, p=2):
    """reg_loss = weight_decay * sum_i ||w_i||_2 over params whose name contains 'weight'.

    Mirrors Regularization.forward (get_weight name filtering + regularization_loss, p=2).
    """
    assert weight_decay > 0, "param weight_decay can not <= 0"
    assert p == 2, "only p=2 (the module default) is implemented in the Pallas path"
    weight_list = [(n, w) for n, w in named_params if "weight" in n]   # get_weight()
    if not weight_list:
        return jnp.float32(0.0)
    sumsq = fused_sum_of_squares([w for _, w in weight_list])
    reg_loss = jnp.sum(jnp.sqrt(sumsq))
    return jnp.float32(weight_decay) * reg_loss


if __name__ == "__main__":
    key = jax.random.PRNGKey(0)
    k1, k2, k3, k4 = jax.random.split(key, 4)

    # Tiny synthetic "model": only params whose name contains 'weight' participate;
    # biases are filtered out, mirroring Regularization.get_weight().
    named_params = [
        ("conv1.weight", jax.random.normal(k1, (4, 4, 3, 3), dtype=jnp.float32)),  # conv filter
        ("fc1.weight",   jax.random.normal(k2, (32, 16), dtype=jnp.float32)),      # linear
        ("fc1.bias",     jax.random.normal(k3, (32,), dtype=jnp.float32)),         # excluded
        ("fc2.weight",   jax.random.normal(k4, (16, 8), dtype=jnp.float32)),       # linear
    ]
    weight_decay = 0.01

    reg_loss = regularization_forward(named_params, weight_decay, p=2)
    reg_loss = jax.block_until_ready(reg_loss)

    # Plain-JAX reference: weight_decay * sum(torch.norm(w, p=2)).
    ref = jnp.float32(weight_decay) * sum(
        jnp.sqrt(jnp.sum(jnp.square(w.astype(jnp.float32))))
        for n, w in named_params if "weight" in n
    )
    assert jnp.allclose(reg_loss, ref, rtol=1e-5, atol=1e-5), (reg_loss, ref)

    print("KERNEL_OK")
</pallas_src>

<mosaic_0001>
module attributes {stable_mosaic.version = 11 : i64} {
  func.func @_fused_sumsq_kernel(%arg0: i32, %arg1: memref<3xi32, #tpu.memory_space<smem>>, %arg2: memref<3xi32, #tpu.memory_space<smem>>, %arg3: memref<512x128xf32, #tpu.memory_space<vmem>>, %arg4: memref<8x128xf32, #tpu.memory_space<vmem>>) attributes {dimension_semantics = [#tpu.dimension_semantics<arbitrary>], iteration_bounds = array<i64: 3>, scalar_prefetch = 2 : i64, scratch_operands = 0 : i64, tpu.core_type = #tpu.core_type<tc>, window_params = [{transform_indices = @transform_0, window_bounds = array<i64: 512, 128>}, {transform_indices = @transform_1, window_bounds = array<i64: 8, 128>}]} {
    %0 = arith.index_cast %arg0 : i32 to index
    %1 = memref.load %arg2[%0] : memref<3xi32, #tpu.memory_space<smem>>
    %c1_i32 = arith.constant 1 : i32
    %2 = arith.cmpi eq, %1, %c1_i32 : i32
    %3 = arith.extui %2 : i1 to i32
    %c0_i32 = arith.constant 0 : i32
    %4 = arith.cmpi ne, %3, %c0_i32 : i32
    scf.if %4 {
      %cst_68 = arith.constant 0.000000e+00 : f32
      %201 = vector.broadcast %cst_68 : f32 to vector<8x128xf32>
      %c0_69 = arith.constant 0 : index
      %c0_70 = arith.constant 0 : index
      %202 = vector.load %arg4[%c0_69, %c0_70] : memref<8x128xf32, #tpu.memory_space<vmem>>, vector<8x128xf32>
      tpu.vector_store %arg4[%c0_69, %c0_70], %201 {strides = array<i32>} : memref<8x128xf32, #tpu.memory_space<vmem>>, vector<8x128xf32>,
    } else {
    }
    %cst = arith.constant 0.000000e+00 : f32
    %5 = vector.broadcast %cst : f32 to vector<8x128xf32>
    %c0 = arith.constant 0 : index
    %c0_0 = arith.constant 0 : index
    %6 = vector.load %arg3[%c0, %c0_0] : memref<512x128xf32, #tpu.memory_space<vmem>>, vector<8x128xf32>
    %7 = arith.mulf %6, %6 : vector<8x128xf32>
    %8 = arith.addf %5, %7 : vector<8x128xf32>
    %c8 = arith.constant 8 : index
    %c0_1 = arith.constant 0 : index
    %9 = vector.load %arg3[%c8, %c0_1] : memref<512x128xf32, #tpu.memory_space<vmem>>, vector<8x128xf32>
    %10 = arith.mulf %9, %9 : vector<8x128xf32>
    %11 = arith.addf %8, %10 : vector<8x128xf32>
    %c16 = arith.constant 16 : index
    %c0_2 = arith.constant 0 : index
    %12 = vector.load %arg3[%c16, %c0_2] : memref<512x128xf32, #tpu.memory_space<vmem>>, vector<8x128xf32>
    %13 = arith.mulf %12, %12 : vector<8x128xf32>
    %14 = arith.addf %11, %13 : vector<8x128xf32>
    %c24 = arith.constant 24 : index
    %c0_3 = arith.constant 0 : index
    %15 = vector.load %arg3[%c24, %c0_3] : memref<512x128xf32, #tpu.memory_space<vmem>>, vector<8x128xf32>
    %16 = arith.mulf %15, %15 : vector<8x128xf32>
    %17 = arith.addf %14, %16 : vector<8x128xf32>
    %c32 = arith.constant 32 : index
    %c0_4 = arith.constant 0 : index
    %18 = vector.load %arg3[%c32, %c0_4] : memref<512x128xf32, #tpu.memory_space<vmem>>, vector<8x128xf32>
    %19 = arith.mulf %18, %18 : vector<8x128xf32>
    %20 = arith.addf %17, %19 : vector<8x128xf32>
    %c40 = arith.constant 40 : index
    %c0_5 = arith.constant 0 : index
    %21 = vector.load %arg3[%c40, %c0_5] : memref<512x128xf32, #tpu.memory_space<vmem>>, vector<8x128xf32>
    %22 = arith.mulf %21, %21 : vector<8x128xf32>
    %23 = arith.addf %20, %22 : vector<8x128xf32>
    %c48 = arith.constant 48 : index
    %c0_6 = arith.constant 0 : index
    %24 = vector.load %arg3[%c48, %c0_6] : memref<512x128xf32, #tpu.memory_space<vmem>>, vector<8x128xf32>
    %25 = arith.mulf %24, %24 : vector<8x128xf32>
    %26 = arith.addf %23, %25 : vector<8x128xf32>
    %c56 = arith.constant 56 : index
    %c0_7 = arith.constant 0 : index
    %27 = vector.load %arg3[%c56, %c0_7] : memref<512x128xf32, #tpu.memory_space<vmem>>, vector<8x128xf32>
    %28 = arith.mulf %27, %27 : vector<8x128xf32>
    %29 = arith.addf %26, %28 : vector<8x128xf32>
    %c64 = arith.constant 64 : index
    %c0_8 = arith.constant 0 : index
    %30 = vector.load %arg3[%c64, %c0_8] : memref<512x128xf32, #tpu.memory_space<vmem>>, vector<8x128xf32>
    %31 = arith.mulf %30, %30 : vector<8x128xf32>
    %32 = arith.addf %29, %31 : vector<8x128xf32>
    %c72 = arith.constant 72 : index
    %c0_9 = arith.constant 0 : index
    %33 = vector.load %arg3[%c72, %c0_9] : memref<512x128xf32, #tpu.memory_space<vmem>>, vector<8x128xf32>
    %34 = arith.mulf %33, %33 : vector<8x128xf32>
    %35 = arith.addf %32, %34 : vector<8x128xf32>
    %c80 = arith.constant 80 : index
    %c0_10 = arith.constant 0 : index
    %36 = vector.load %arg3[%c80, %c0_10] : memref<512x128xf32, #tpu.memory_space<vmem>>, vector<8x128xf32>
    %37 = arith.mulf %36, %36 : vector<8x128xf32>
    %38 = arith.addf %35, %37 : vector<8x128xf32>
    %c88 = arith.constant 88 : index
    %c0_11 = arith.constant 0 : index
    %39 = vector.load %arg3[%c88, %c0_11] : memref<512x128xf32, #tpu.memory_space<vmem>>, vector<8x128xf32>
    %40 = arith.mulf %39, %39 : vector<8x128xf32>
    %41 = arith.addf %38, %40 : vector<8x128xf32>
    %c96 = arith.constant 96 : index
    %c0_12 = arith.constant 0 : index
    %42 = vector.load %arg3[%c96, %c0_12] : memref<512x128xf32, #tpu.memory_space<vmem>>, vector<8x128xf32>
    %43 = arith.mulf %42, %42 : vector<8x128xf32>
    %44 = arith.addf %41, %43 : vector<8x128xf32>
    %c104 = arith.constant 104 : index
    %c0_13 = arith.constant 0 : index
    %45 = vector.load %arg3[%c104, %c0_13] : memref<512x128xf32, #tpu.memory_space<vmem>>, vector<8x128xf32>
    %46 = arith.mulf %45, %45 : vector<8x128xf32>
    %47 = arith.addf %44, %46 : vector<8x128xf32>
    %c112 = arith.constant 112 : index
    %c0_14 = arith.constant 0 : index
    %48 = vector.load %arg3[%c112, %c0_14] : memref<512x128xf32, #tpu.memory_space<vmem>>, vector<8x128xf32>
    %49 = arith.mulf %48, %48 : vector<8x128xf32>
    %50 = arith.addf %47, %49 : vector<8x128xf32>
    %c120 = arith.constant 120 : index
    %c0_15 = arith.constant 0 : index
    %51 = vector.load %arg3[%c120, %c0_15] : memref<512x128xf32, #tpu.memory_space<vmem>>, vector<8x128xf32>
    %52 = arith.mulf %51, %51 : vector<8x128xf32>
    %53 = arith.addf %50, %52 : vector<8x128xf32>
    %c128 = arith.constant 128 : index
    %c0_16 = arith.constant 0 : index
    %54 = vector.load %arg3[%c128, %c0_16] : memref<512x128xf32, #tpu.memory_space<vmem>>, vector<8x128xf32>
    %55 = arith.mulf %54, %54 : vector<8x128xf32>
    %56 = arith.addf %53, %55 : vector<8x128xf32>
    %c136 = arith.constant 136 : index
    %c0_17 = arith.constant 0 : index
    %57 = vector.load %arg3[%c136, %c0_17] : memref<512x128xf32, #tpu.memory_space<vmem>>, vector<8x128xf32>
    %58 = arith.mulf %57, %57 : vector<8x128xf32>
    %59 = arith.addf %56, %58 : vector<8x128xf32>
    %c144 = arith.constant 144 : index
    %c0_18 = arith.constant 0 : index
    %60 = vector.load %arg3[%c144, %c0_18] : memref<512x128xf32, #tpu.memory_space<vmem>>, vector<8x128xf32>
    %61 = arith.mulf %60, %60 : vector<8x128xf32>
    %62 = arith.addf %59, %61 : vector<8x128xf32>
    %c152 = arith.constant 152 : index
    %c0_19 = arith.constant 0 : index
    %63 = vector.load %arg3[%c152, %c0_19] : memref<512x128xf32, #tpu.memory_space<vmem>>, vector<8x128xf32>
    %64 = arith.mulf %63, %63 : vector<8x128xf32>
    %65 = arith.addf %62, %64 : vector<8x128xf32>
    %c160 = arith.constant 160 : index
    %c0_20 = arith.constant 0 : index
    %66 = vector.load %arg3[%c160, %c0_20] : memref<512x128xf32, #tpu.memory_space<vmem>>, vector<8x128xf32>
    %67 = arith.mulf %66, %66 : vector<8x128xf32>
    %68 = arith.addf %65, %67 : vector<8x128xf32>
    %c168 = arith.constant 168 : index
    %c0_21 = arith.constant 0 : index
    %69 = vector.load %arg3[%c168, %c0_21] : memref<512x128xf32, #tpu.memory_space<vmem>>, vector<8x128xf32>
    %70 = arith.mulf %69, %69 : vector<8x128xf32>
    %71 = arith.addf %68, %70 : vector<8x128xf32>
    %c176 = arith.constant 176 : index
    %c0_22 = arith.constant 0 : index
    %72 = vector.load %arg3[%c176, %c0_22] : memref<512x128xf32, #tpu.memory_space<vmem>>, vector<8x128xf32>
    %73 = arith.mulf %72, %72 : vector<8x128xf32>
    %74 = arith.addf %71, %73 : vector<8x128xf32>
    %c184 = arith.constant 184 : index
    %c0_23 = arith.constant 0 : index
    %75 = vector.load %arg3[%c184, %c0_23] : memref<512x128xf32, #tpu.memory_space<vmem>>, vector<8x128xf32>
    %76 = arith.mulf %75, %75 : vector<8x128xf32>
    %77 = arith.addf %74, %76 : vector<8x128xf32>
    %c192 = arith.constant 192 : index
    %c0_24 = arith.constant 0 : index
    %78 = vector.load %arg3[%c192, %c0_24] : memref<512x128xf32, #tpu.memory_space<vmem>>, vector<8x128xf32>
    %79 = arith.mulf %78, %78 : vector<8x128xf32>
    %80 = arith.addf %77, %79 : vector<8x128xf32>
    %c200 = arith.constant 200 : index
    %c0_25 = arith.constant 0 : index
    %81 = vector.load %arg3[%c200, %c0_25] : memref<512x128xf32, #tpu.memory_space<vmem>>, vector<8x128xf32>
    %82 = arith.mulf %81, %81 : vector<8x128xf32>
    %83 = arith.addf %80, %82 : vector<8x128xf32>
    %c208 = arith.constant 208 : index
    %c0_26 = arith.constant 0 : index
    %84 = vector.load %arg3[%c208, %c0_26] : memref<512x128xf32, #tpu.memory_space<vmem>>, vector<8x128xf32>
    %85 = arith.mulf %84, %84 : vector<8x128xf32>
    %86 = arith.addf %83, %85 : vector<8x128xf32>
    %c216 = arith.constant 216 : index
    %c0_27 = arith.constant 0 : index
    %87 = vector.load %arg3[%c216, %c0_27] : memref<512x128xf32, #tpu.memory_space<vmem>>, vector<8x128xf32>
    %88 = arith.mulf %87, %87 : vector<8x128xf32>
    %89 = arith.addf %86, %88 : vector<8x128xf32>
    %c224 = arith.constant 224 : index
    %c0_28 = arith.constant 0 : index
    %90 = vector.load %arg3[%c224, %c0_28] : memref<512x128xf32, #tpu.memory_space<vmem>>, vector<8x128xf32>
    %91 = arith.mulf %90, %90 : vector<8x128xf32>
    %92 = arith.addf %89, %91 : vector<8x128xf32>
    %c232 = arith.constant 232 : index
    %c0_29 = arith.constant 0 : index
    %93 = vector.load %arg3[%c232, %c0_29] : memref<512x128xf32, #tpu.memory_space<vmem>>, vector<8x128xf32>
    %94 = arith.mulf %93, %93 : vector<8x128xf32>
    %95 = arith.addf %92, %94 : vector<8x128xf32>
    %c240 = arith.constant 240 : index
    %c0_30 = arith.constant 0 : index
    %96 = vector.load %arg3[%c240, %c0_30] : memref<512x128xf32, #tpu.memory_space<vmem>>, vector<8x128xf32>
    %97 = arith.mulf %96, %96 : vector<8x128xf32>
    %98 = arith.addf %95, %97 : vector<8x128xf32>
    %c248 = arith.constant 248 : index
    %c0_31 = arith.constant 0 : index
    %99 = vector.load %arg3[%c248, %c0_31] : memref<512x128xf32, #tpu.memory_space<vmem>>, vector<8x128xf32>
    %100 = arith.mulf %99, %99 : vector<8x128xf32>
    %101 = arith.addf %98, %100 : vector<8x128xf32>
    %c256 = arith.constant 256 : index
    %c0_32 = arith.constant 0 : index
    %102 = vector.load %arg3[%c256, %c0_32] : memref<512x128xf32, #tpu.memory_space<vmem>>, vector<8x128xf32>
    %103 = arith.mulf %102, %102 : vector<8x128xf32>
    %104 = arith.addf %101, %103 : vector<8x128xf32>
    %c264 = arith.constant 264 : index
    %c0_33 = arith.constant 0 : index
    %105 = vector.load %arg3[%c264, %c0_33] : memref<512x128xf32, #tpu.memory_space<vmem>>, vector<8x128xf32>
    %106 = arith.mulf %105, %105 : vector<8x128xf32>
    %107 = arith.addf %104, %106 : vector<8x128xf32>
    %c272 = arith.constant 272 : index
    %c0_34 = arith.constant 0 : index
    %108 = vector.load %arg3[%c272, %c0_34] : memref<512x128xf32, #tpu.memory_space<vmem>>, vector<8x128xf32>
    %109 = arith.mulf %108, %108 : vector<8x128xf32>
    %110 = arith.addf %107, %109 : vector<8x128xf32>
    %c280 = arith.constant 280 : index
    %c0_35 = arith.constant 0 : index
    %111 = vector.load %arg3[%c280, %c0_35] : memref<512x128xf32, #tpu.memory_space<vmem>>, vector<8x128xf32>
    %112 = arith.mulf %111, %111 : vector<8x128xf32>
    %113 = arith.addf %110, %112 : vector<8x128xf32>
    %c288 = arith.constant 288 : index
    %c0_36 = arith.constant 0 : index
    %114 = vector.load %arg3[%c288, %c0_36] : memref<512x128xf32, #tpu.memory_space<vmem>>, vector<8x128xf32>
    %115 = arith.mulf %114, %114 : vector<8x128xf32>
    %116 = arith.addf %113, %115 : vector<8x128xf32>
    %c296 = arith.constant 296 : index
    %c0_37 = arith.constant 0 : index
    %117 = vector.load %arg3[%c296, %c0_37] : memref<512x128xf32, #tpu.memory_space<vmem>>, vector<8x128xf32>
    %118 = arith.mulf %117, %117 : vector<8x128xf32>
    %119 = arith.addf %116, %118 : vector<8x128xf32>
    %c304 = arith.constant 304 : index
    %c0_38 = arith.constant 0 : index
    %120 = vector.load %arg3[%c304, %c0_38] : memref<512x128xf32, #tpu.memory_space<vmem>>, vector<8x128xf32>
    %121 = arith.mulf %120, %120 : vector<8x128xf32>
    %122 = arith.addf %119, %121 : vector<8x128xf32>
    %c312 = arith.constant 312 : index
    %c0_39 = arith.constant 0 : index
    %123 = vector.load %arg3[%c312, %c0_39] : memref<512x128xf32, #tpu.memory_space<vmem>>, vector<8x128xf32>
    %124 = arith.mulf %123, %123 : vector<8x128xf32>
    %125 = arith.addf %122, %124 : vector<8x128xf32>
    %c320 = arith.constant 320 : index
    %c0_40 = arith.constant 0 : index
    %126 = vector.load %arg3[%c320, %c0_40] : memref<512x128xf32, #tpu.memory_space<vmem>>, vector<8x128xf32>
    %127 = arith.mulf %126, %126 : vector<8x128xf32>
    %128 = arith.addf %125, %127 : vector<8x128xf32>
    %c328 = arith.constant 328 : index
    %c0_41 = arith.constant 0 : index
    %129 = vector.load %arg3[%c328, %c0_41] : memref<512x128xf32, #tpu.memory_space<vmem>>, vector<8x128xf32>
    %130 = arith.mulf %129, %129 : vector<8x128xf32>
    %131 = arith.addf %128, %130 : vector<8x128xf32>
    %c336 = arith.constant 336 : index
    %c0_42 = arith.constant 0 : index
    %132 = vector.load %arg3[%c336, %c0_42] : memref<512x128xf32, #tpu.memory_space<vmem>>, vector<8x128xf32>
    %133 = arith.mulf %132, %132 : vector<8x128xf32>
    %134 = arith.addf %131, %133 : vector<8x128xf32>
    %c344 = arith.constant 344 : index
    %c0_43 = arith.constant 0 : index
    %135 = vector.load %arg3[%c344, %c0_43] : memref<512x128xf32, #tpu.memory_space<vmem>>, vector<8x128xf32>
    %136 = arith.mulf %135, %135 : vector<8x128xf32>
    %137 = arith.addf %134, %136 : vector<8x128xf32>
    %c352 = arith.constant 352 : index
    %c0_44 = arith.constant 0 : index
    %138 = vector.load %arg3[%c352, %c0_44] : memref<512x128xf32, #tpu.memory_space<vmem>>, vector<8x128xf32>
    %139 = arith.mulf %138, %138 : vector<8x128xf32>
    %140 = arith.addf %137, %139 : vector<8x128xf32>
    %c360 = arith.constant 360 : index
    %c0_45 = arith.constant 0 : index
    %141 = vector.load %arg3[%c360, %c0_45] : memref<512x128xf32, #tpu.memory_space<vmem>>, vector<8x128xf32>
    %142 = arith.mulf %141, %141 : vector<8x128xf32>
    %143 = arith.addf %140, %142 : vector<8x128xf32>
    %c368 = arith.constant 368 : index
    %c0_46 = arith.constant 0 : index
    %144 = vector.load %arg3[%c368, %c0_46] : memref<512x128xf32, #tpu.memory_space<vmem>>, vector<8x128xf32>
    %145 = arith.mulf %144, %144 : vector<8x128xf32>
    %146 = arith.addf %143, %145 : vector<8x128xf32>
    %c376 = arith.constant 376 : index
    %c0_47 = arith.constant 0 : index
    %147 = vector.load %arg3[%c376, %c0_47] : memref<512x128xf32, #tpu.memory_space<vmem>>, vector<8x128xf32>
    %148 = arith.mulf %147, %147 : vector<8x128xf32>
    %149 = arith.addf %146, %148 : vector<8x128xf32>
    %c384 = arith.constant 384 : index
    %c0_48 = arith.constant 0 : index
    %150 = vector.load %arg3[%c384, %c0_48] : memref<512x128xf32, #tpu.memory_space<vmem>>, vector<8x128xf32>
    %151 = arith.mulf %150, %150 : vector<8x128xf32>
    %152 = arith.addf %149, %151 : vector<8x128xf32>
    %c392 = arith.constant 392 : index
    %c0_49 = arith.constant 0 : index
    %153 = vector.load %arg3[%c392, %c0_49] : memref<512x128xf32, #tpu.memory_space<vmem>>, vector<8x128xf32>
    %154 = arith.mulf %153, %153 : vector<8x128xf32>
    %155 = arith.addf %152, %154 : vector<8x128xf32>
    %c400 = arith.constant 400 : index
    %c0_50 = arith.constant 0 : index
    %156 = vector.load %arg3[%c400, %c0_50] : memref<512x128xf32, #tpu.memory_space<vmem>>, vector<8x128xf32>
    %157 = arith.mulf %156, %156 : vector<8x128xf32>
    %158 = arith.addf %155, %157 : vector<8x128xf32>
    %c408 = arith.constant 408 : index
    %c0_51 = arith.constant 0 : index
    %159 = vector.load %arg3[%c408, %c0_51] : memref<512x128xf32, #tpu.memory_space<vmem>>, vector<8x128xf32>
    %160 = arith.mulf %159, %159 : vector<8x128xf32>
    %161 = arith.addf %158, %160 : vector<8x128xf32>
    %c416 = arith.constant 416 : index
    %c0_52 = arith.constant 0 : index
    %162 = vector.load %arg3[%c416, %c0_52] : memref<512x128xf32, #tpu.memory_space<vmem>>, vector<8x128xf32>
    %163 = arith.mulf %162, %162 : vector<8x128xf32>
    %164 = arith.addf %161, %163 : vector<8x128xf32>
    %c424 = arith.constant 424 : index
    %c0_53 = arith.constant 0 : index
    %165 = vector.load %arg3[%c424, %c0_53] : memref<512x128xf32, #tpu.memory_space<vmem>>, vector<8x128xf32>
    %166 = arith.mulf %165, %165 : vector<8x128xf32>
    %167 = arith.addf %164, %166 : vector<8x128xf32>
    %c432 = arith.constant 432 : index
    %c0_54 = arith.constant 0 : index
    %168 = vector.load %arg3[%c432, %c0_54] : memref<512x128xf32, #tpu.memory_space<vmem>>, vector<8x128xf32>
    %169 = arith.mulf %168, %168 : vector<8x128xf32>
    %170 = arith.addf %167, %169 : vector<8x128xf32>
    %c440 = arith.constant 440 : index
    %c0_55 = arith.constant 0 : index
    %171 = vector.load %arg3[%c440, %c0_55] : memref<512x128xf32, #tpu.memory_space<vmem>>, vector<8x128xf32>
    %172 = arith.mulf %171, %171 : vector<8x128xf32>
    %173 = arith.addf %170, %172 : vector<8x128xf32>
    %c448 = arith.constant 448 : index
    %c0_56 = arith.constant 0 : index
    %174 = vector.load %arg3[%c448, %c0_56] : memref<512x128xf32, #tpu.memory_space<vmem>>, vector<8x128xf32>
    %175 = arith.mulf %174, %174 : vector<8x128xf32>
    %176 = arith.addf %173, %175 : vector<8x128xf32>
    %c456 = arith.constant 456 : index
    %c0_57 = arith.constant 0 : index
    %177 = vector.load %arg3[%c456, %c0_57] : memref<512x128xf32, #tpu.memory_space<vmem>>, vector<8x128xf32>
    %178 = arith.mulf %177, %177 : vector<8x128xf32>
    %179 = arith.addf %176, %178 : vector<8x128xf32>
    %c464 = arith.constant 464 : index
    %c0_58 = arith.constant 0 : index
    %180 = vector.load %arg3[%c464, %c0_58] : memref<512x128xf32, #tpu.memory_space<vmem>>, vector<8x128xf32>
    %181 = arith.mulf %180, %180 : vector<8x128xf32>
    %182 = arith.addf %179, %181 : vector<8x128xf32>
    %c472 = arith.constant 472 : index
    %c0_59 = arith.constant 0 : index
    %183 = vector.load %arg3[%c472, %c0_59] : memref<512x128xf32, #tpu.memory_space<vmem>>, vector<8x128xf32>
    %184 = arith.mulf %183, %183 : vector<8x128xf32>
    %185 = arith.addf %182, %184 : vector<8x128xf32>
    %c480 = arith.constant 480 : index
    %c0_60 = arith.constant 0 : index
    %186 = vector.load %arg3[%c480, %c0_60] : memref<512x128xf32, #tpu.memory_space<vmem>>, vector<8x128xf32>
    %187 = arith.mulf %186, %186 : vector<8x128xf32>
    %188 = arith.addf %185, %187 : vector<8x128xf32>
    %c488 = arith.constant 488 : index
    %c0_61 = arith.constant 0 : index
    %189 = vector.load %arg3[%c488, %c0_61] : memref<512x128xf32, #tpu.memory_space<vmem>>, vector<8x128xf32>
    %190 = arith.mulf %189, %189 : vector<8x128xf32>
    %191 = arith.addf %188, %190 : vector<8x128xf32>
    %c496 = arith.constant 496 : index
    %c0_62 = arith.constant 0 : index
    %192 = vector.load %arg3[%c496, %c0_62] : memref<512x128xf32, #tpu.memory_space<vmem>>, vector<8x128xf32>
    %193 = arith.mulf %192, %192 : vector<8x128xf32>
    %194 = arith.addf %191, %193 : vector<8x128xf32>
    %c504 = arith.constant 504 : index
    %c0_63 = arith.constant 0 : index
    %195 = vector.load %arg3[%c504, %c0_63] : memref<512x128xf32, #tpu.memory_space<vmem>>, vector<8x128xf32>
    %196 = arith.mulf %195, %195 : vector<8x128xf32>
    %197 = arith.addf %194, %196 : vector<8x128xf32>
    %c0_64 = arith.constant 0 : index
    %c0_65 = arith.constant 0 : index
    %198 = vector.load %arg4[%c0_64, %c0_65] : memref<8x128xf32, #tpu.memory_space<vmem>>, vector<8x128xf32>
    %199 = arith.addf %198, %197 : vector<8x128xf32>
    %c0_66 = arith.constant 0 : index
    %c0_67 = arith.constant 0 : index
    %200 = vector.load %arg4[%c0_66, %c0_67] : memref<8x128xf32, #tpu.memory_space<vmem>>, vector<8x128xf32>
    tpu.vector_store %arg4[%c0_66, %c0_67], %199 {strides = array<i32>} : memref<8x128xf32, #tpu.memory_space<vmem>>, vector<8x128xf32>,
    return
  }
  func.func @transform_0(%arg0: i32, %arg1: memref<3xi32, #tpu.memory_space<smem>>, %arg2: memref<3xi32, #tpu.memory_space<smem>>) -> (i32, i32) {
    %c0_i32 = arith.constant 0 : i32
    %c0_i32_0 = arith.constant 0 : i32
    return %arg0, %c0_i32 : i32, i32
  }
  func.func @transform_1(%arg0: i32, %arg1: memref<3xi32, #tpu.memory_space<smem>>, %arg2: memref<3xi32, #tpu.memory_space<smem>>) -> (i32, i32) {
    %0 = arith.index_cast %arg0 : i32 to index
    %1 = memref.load %arg1[%0] : memref<3xi32, #tpu.memory_space<smem>>
    %c0_i32 = arith.constant 0 : i32
    %c0_i32_0 = arith.constant 0 : i32
    return %1, %c0_i32 : i32, i32
  }
}

</mosaic_0001>

<llo_original>
// kernel: tpu_custom_call.1
$region0: #{tpu_custom_call.1}
  #allocation0 [shape = 'u32[]', space=smem, size = 0x4, offset = 0x4, fixed_abs, tag = 'smem constant byte address 0x4 - core index']
  #allocation1 [shape = 'u32[72,128]{1,0:T(1,128)}', space=vmem, size = 0x9000, scoped, tag = 'internal scratch']
  #allocation2 [shape = 's32[1]{0}', space=sflag, size = 0x4, scoped, tag = 'scoped memory for tpu_custom_call.1']
  #allocation3 [shape = 'u8[512]{0}', space=smem, size = 0x200, scoped, tag = 'prefetched SMEM operand 0']
  #allocation4 [shape = 'u8[512]{0}', space=smem, size = 0x200, scoped, tag = 'prefetched SMEM operand 1']
  %s0 = inlined_call_operand.hbm [shape: s32[3], index: 0, kind: input, shape index: {}]
  %s1 = inlined_call_operand.hbm [shape: s32[3], index: 1, kind: input, shape index: {}]
  %s2 = inlined_call_operand.hbm [shape: f32[1536,128], index: 2, kind: input, shape index: {}]
  %s3 = inlined_call_operand.hbm [shape: f32[24,128], index: 3, kind: output, shape index: {}]
  %s4 = sld [smem:[#allocation0]]
  $region45: #{tpu_custom_call.1} parent=0
    _
  %s6 = ssub.s32 1, %s4
  %s7 = scalar_select 0, %s6, %s4
  %s9 = sshll.u32 %s0, 4
  %s10 = int_to_ptr.hbm [resolvable:$true] %s9
  %12 = dma.hbm_to_smem %s10, 16, [#allocation3], [#allocation2]
  %s14 = sshll.u32 %s1, 4
  %s15 = int_to_ptr.hbm [resolvable:$true] %s14
  %17 = dma.hbm_to_smem %s15, 16, [#allocation4], [#allocation2]
  %19 = dma.done [#allocation2], 32
  %20 = sfence
  $region1: #{tpu_custom_call.1} parent=0
    #allocation5 [shape = 'u8[524288]{0}', space=vmem, size = 0x80000, scoped, tag = 'input window, operand 2']
    #allocation6 [shape = 's32[2]{0}', space=sflag, size = 0x8, scoped, tag = 'scoped memory for tpu_custom_call.1']
    #allocation7 [shape = 's32[2]{0}', space=sflag, size = 0x8, scoped, tag = 'scoped memory for tpu_custom_call.1']
    #allocation8 [shape = 'u8[8192]{0}', space=vmem, size = 0x2000, scoped, tag = 'output window, operand 0']
    %21 = vsyncpa [#allocation6], 0
    %s22 = scalar_lea.sflag [#allocation6], 1
    %23 = vsyncpa %s22, 0
    %24 = vsyncpa [#allocation7], 0
    %s25 = scalar_lea.sflag [#allocation7], 1
    %26 = vsyncpa %s25, 0
    loop: start=0, step=1, limit=5
    $region2: #{tpu_custom_call.1} parent=1 // loop_pre_header
      _
    $region3: #{tpu_custom_call.1} parent=1 // loop_header
      %s28 = sphi 0, %s32
      %p29 = scmp.ge.s32.totalorder %s28, 5
      %s38 = sphi 0, %s40
      %s41 = sphi 0, %s38
      %s42 = sphi 0, %s41
      %s58 = sphi 0, %s42
      %s66 = sphi 0, %s68
      %s69 = sphi 0, %s66
      %s70 = sphi 0, %s69
      %s86 = sphi 0, %s70
    $region4: #{tpu_custom_call.1} parent=1 // loop_header_branch
      %31 = sbr.rel (%p29) target = $region8
    $region5: #{tpu_custom_call.1} parent=1 // loop_body
      %s33 = ssub.s32 %s28, 1
      %s34 = ssub.s32 %s28, 2
      %s35 = sadd.s32 %s28, 1
      %s36 = ssub.s32 %s28, %s35
      %p37 = scmp.eq.s32.totalorder %s36, 0
      %s39 = sadd.s32 %s38, 1
      %s40 = scalar_select %p37, %s38, %s39
      %p43 = pneg %p37
      %p44 = scmp.eq.s32.totalorder %s28, 2
      %p45 = por %p43, %p44
      %p46 = scmp.ne.s32.totalorder %s38, %s41
      %p47 = scmp.eq.s32.totalorder %s28, 0
      %p48 = por %p46, %p47
      %p49 = scmp.ne.s32.totalorder %s38, %s41
      %p50 = scmp.eq.s32.totalorder %s33, 2
      %p51 = por %p49, %p50
      %p52 = scmp.ne.s32.totalorder %s41, %s42
      %p53 = scmp.eq.s32.totalorder %s33, 0
      %p54 = por %p52, %p53
      %p55 = scmp.ne.s32.totalorder %s41, %s42
      %p56 = scmp.eq.s32.totalorder %s34, 2
      %p57 = por %p55, %p56
      %p59 = scmp.ne.s32.totalorder %s42, %s58
      %p60 = scmp.eq.s32.totalorder %s34, 0
      %p61 = por %p59, %p60
      %s62 = sld [smem:[#allocation3 + %s28]]
      %s63 = sld [smem:[#allocation3 + %s35]]
      %s64 = ssub.s32 %s62, %s63
      %p65 = scmp.eq.s32.totalorder %s64, 0
      %s67 = sadd.s32 %s66, 1
      %s68 = scalar_select %p65, %s66, %s67
      %p71 = pneg %p65
      %p72 = scmp.eq.s32.totalorder %s28, 2
      %p73 = por %p71, %p72
      %p74 = scmp.ne.s32.totalorder %s66, %s69
      %p75 = scmp.eq.s32.totalorder %s28, 0
      %p76 = por %p74, %p75
      %p77 = scmp.ne.s32.totalorder %s66, %s69
      %p78 = scmp.eq.s32.totalorder %s33, 2
      %p79 = por %p77, %p78
      %p80 = scmp.ne.s32.totalorder %s69, %s70
      %p81 = scmp.eq.s32.totalorder %s33, 0
      %p82 = por %p80, %p81
      %p83 = scmp.ne.s32.totalorder %s69, %s70
      %p84 = scmp.eq.s32.totalorder %s34, 2
      %p85 = por %p83, %p84
      %p87 = scmp.ne.s32.totalorder %s70, %s86
      %p88 = scmp.eq.s32.totalorder %s34, 0
      %p89 = por %p87, %p88
      %p90 = scmp.le.s32.totalorder 1, %s28
      %p91 = scmp.lt.s32.totalorder %s28, 4
      %p92 = pnand %p90, %p91
      %p93 = pneg %p92
      // Predicated region
      $region9: #{tpu_custom_call.1} parent=5 // pred_check
        _
      $region10: #{tpu_custom_call.1} parent=5 // pred_check_branch
        %95 = sbr.rel (%p92) target = $region12
      $region11: #{tpu_custom_call.1} parent=5 // pred_region
        %s96 = ssub.s32 %s28, 1
      $region12: #{tpu_custom_call.1} parent=5 // pred_fallthru
        _
      %p97 = scmp.lt.s32.totalorder %s28, 3
      // Predicated region
      $region13: #{tpu_custom_call.1} parent=5 // pred_check
        %p98 = pneg %p97
      $region14: #{tpu_custom_call.1} parent=5 // pred_check_branch
        %100 = sbr.rel (%p98) target = $region16
      $region15: #{tpu_custom_call.1} parent=5 // pred_region
        // Predicated region
        $region17: #{tpu_custom_call.1} parent=15 // pred_check
          %p101 = pneg %p48
        $region18: #{tpu_custom_call.1} parent=15 // pred_check_branch
          %103 = sbr.rel (%p101) target = $region20
        $region19: #{tpu_custom_call.1} parent=15 // pred_region
          %s104 = sand.u32 %s38, 1
          %s105 = scalar_lea.sflag [#allocation6], %s104
          %s106 = sand.u32 %s38, 1
          %s107 = smul.addr %s106, 512
          %s108 = scalar_lea.vmem [#allocation5], %s107
          %s109 = smul.u32 64, %s28
          %111 = vsyncadd %s105, 0
          %s112 = smul.addr %s109, 8
          %s113 = scalar_lea.hbm %s2, %s112
          %s114 = sshll.u32 %s113, 4
          %s115 = int_to_ptr.hbm [resolvable:$true] %s114
          %s116 = sshll.u32 %s108, 4
          %s117 = int_to_ptr.vmem [resolvable:$true] %s116
          %122 = dma.hbm_to_vmem [thread:$0]  %s115, 8192, %s117, %s105, 128, 128, 8
        $region20: #{tpu_custom_call.1} parent=15 // pred_fallthru
          _
      $region16: #{tpu_custom_call.1} parent=5 // pred_fallthru
        _
      %p123 = scmp.le.s32.totalorder 1, %s28
      %p124 = scmp.lt.s32.totalorder %s28, 4
      %p125 = pnand %p123, %p124
      %p126 = pneg %p125
      // Predicated region
      $region21: #{tpu_custom_call.1} parent=5 // pred_check
        _
      $region22: #{tpu_custom_call.1} parent=5 // pred_check_branch
        %128 = sbr.rel (%p125) target = $region24
      $region23: #{tpu_custom_call.1} parent=5 // pred_region
        %s129 = ssub.s32 %s28, 1
        %s130 = sand.u32 %s41, 1
        %s131 = scalar_lea.sflag [#allocation6], %s130
        %s132 = sand.u32 %s41, 1
        %s133 = smul.addr %s132, 512
        %s134 = scalar_lea.vmem [#allocation5], %s133
        // Predicated region
        $region25: #{tpu_custom_call.1} parent=23 // pred_check
          %p135 = pneg %p54
        $region26: #{tpu_custom_call.1} parent=23 // pred_check_branch
          %137 = sbr.rel (%p135) target = $region28
        $region27: #{tpu_custom_call.1} parent=23 // pred_region
          %139 = dma.done %s131, 8192
        $region28: #{tpu_custom_call.1} parent=23 // pred_fallthru
          _
        %s140 = sand.u32 %s41, 1
        %s141 = scalar_lea.sflag [#allocation6], %s140
        %s142 = sand.u32 %s41, 1
        %s143 = smul.addr %s142, 512
        %s144 = scalar_lea.vmem [#allocation5], %s143
        %p145 = pneg %p54
        %p146 = pneg %p51
        %p147 = pneg %p82
        %p148 = pneg %p79
        %s149 = sand.u32 %s69, 1
        %s150 = scalar_lea.sflag [#allocation7], %s149
        %s151 = sand.u32 %s69, 1
        %s152 = smul.addr %s151, 8
        %s153 = scalar_lea.vmem [#allocation8], %s152
        %s154 = smul.u32 64, %s33
        %s155 = sld [smem:[#allocation3 + %s33]]
        %s156 = sld [smem:[#allocation4 + %s33]]
        %p157 = scmp.eq.s32.totalorder %s156, 1
        // Predicated region
        $region29: #{tpu_custom_call.1} parent=23 // pred_check
          %p158 = pneg %p157
        $region30: #{tpu_custom_call.1} parent=23 // pred_check_branch
          %160 = sbr.rel (%p158) target = $region32
        $region31: #{tpu_custom_call.1} parent=23 // pred_region
          %161 = vst [vmem:[%s153] sm:$0xff] 0.0
        $region32: #{tpu_custom_call.1} parent=23 // pred_fallthru
          _
        %v162 = vld [vmem:[%s134] sm:$0xff]
        %v163 = vmul.f32 %v162, %v162
        %v164 = vadd.f32 %v163, 0.0
        %v165 = vld [vmem:[%s134 + $0x8] sm:$0xff]
        %v166 = vmul.f32 %v165, %v165
        %v167 = vadd.f32 %v164, %v166
        %v168 = vld [vmem:[%s134 + $0x10] sm:$0xff]
        %v169 = vmul.f32 %v168, %v168
        %v170 = vadd.f32 %v167, %v169
        %v171 = vld [vmem:[%s134 + $0x18] sm:$0xff]
        %v172 = vmul.f32 %v171, %v171
        %v173 = vadd.f32 %v170, %v172
        %v174 = vld [vmem:[%s134 + $0x20] sm:$0xff]
        %v175 = vmul.f32 %v174, %v174
        %v176 = vadd.f32 %v173, %v175
        %v177 = vld [vmem:[%s134 + $0x28] sm:$0xff]
        %v178 = vmul.f32 %v177, %v177
        %v179 = vadd.f32 %v176, %v178
        %v180 = vld [vmem:[%s134 + $0x30] sm:$0xff]
        %v181 = vmul.f32 %v180, %v180
        %v182 = vadd.f32 %v179, %v181
        %v183 = vld [vmem:[%s134 + $0x38] sm:$0xff]
        %v184 = vmul.f32 %v183, %v183
        %v185 = vadd.f32 %v182, %v184
        %v186 = vld [vmem:[%s134 + $0x40] sm:$0xff]
        %v187 = vmul.f32 %v186, %v186
        %v188 = vadd.f32 %v185, %v187
        %v189 = vld [vmem:[%s134 + $0x48] sm:$0xff]
        %v190 = vmul.f32 %v189, %v189
        %v191 = vadd.f32 %v188, %v190
        %v192 = vld [vmem:[%s134 + $0x50] sm:$0xff]
        %v193 = vmul.f32 %v192, %v192
        %v194 = vadd.f32 %v191, %v193
        %v195 = vld [vmem:[%s134 + $0x58] sm:$0xff]
        %v196 = vmul.f32 %v195, %v195
        %v197 = vadd.f32 %v194, %v196
        %v198 = vld [vmem:[%s134 + $0x60] sm:$0xff]
        %v199 = vmul.f32 %v198, %v198
        %v200 = vadd.f32 %v197, %v199
        %v201 = vld [vmem:[%s134 + $0x68] sm:$0xff]
        %v202 = vmul.f32 %v201, %v201
        %v203 = vadd.f32 %v200, %v202
        %v204 = vld [vmem:[%s134 + $0x70] sm:$0xff]
        %v205 = vmul.f32 %v204, %v204
        %v206 = vadd.f32 %v203, %v205
        %v207 = vld [vmem:[%s134 + $0x78] sm:$0xff]
        %v208 = vmul.f32 %v207, %v207
        %v209 = vadd.f32 %v206, %v208
        %v210 = vld [vmem:[%s134 + $0x80] sm:$0xff]
        %v211 = vmul.f32 %v210, %v210
        %v212 = vadd.f32 %v209, %v211
        %v213 = vld [vmem:[%s134 + $0x88] sm:$0xff]
        %v214 = vmul.f32 %v213, %v213
        %v215 = vadd.f32 %v212, %v214
        %v216 = vld [vmem:[%s134 + $0x90] sm:$0xff]
        %v217 = vmul.f32 %v216, %v216
        %v218 = vadd.f32 %v215, %v217
        %v219 = vld [vmem:[%s134 + $0x98] sm:$0xff]
        %v220 = vmul.f32 %v219, %v219
        %v221 = vadd.f32 %v218, %v220
        %v222 = vld [vmem:[%s134 + $0xa0] sm:$0xff]
        %v223 = vmul.f32 %v222, %v222
        %v224 = vadd.f32 %v221, %v223
        %v225 = vld [vmem:[%s134 + $0xa8] sm:$0xff]
        %v226 = vmul.f32 %v225, %v225
        %v227 = vadd.f32 %v224, %v226
        %v228 = vld [vmem:[%s134 + $0xb0] sm:$0xff]
        %v229 = vmul.f32 %v228, %v228
        %v230 = vadd.f32 %v227, %v229
        %v231 = vld [vmem:[%s134 + $0xb8] sm:$0xff]
        %v232 = vmul.f32 %v231, %v231
        %v233 = vadd.f32 %v230, %v232
        %v234 = vld [vmem:[%s134 + $0xc0] sm:$0xff]
        %v235 = vmul.f32 %v234, %v234
        %v236 = vadd.f32 %v233, %v235
        %v237 = vld [vmem:[%s134 + $0xc8] sm:$0xff]
        %v238 = vmul.f32 %v237, %v237
        %v239 = vadd.f32 %v236, %v238
        %v240 = vld [vmem:[%s134 + $0xd0] sm:$0xff]
        %v241 = vmul.f32 %v240, %v240
        %v242 = vadd.f32 %v239, %v241
        %v243 = vld [vmem:[%s134 + $0xd8] sm:$0xff]
        %v244 = vmul.f32 %v243, %v243
        %v245 = vadd.f32 %v242, %v244
        %v246 = vld [vmem:[%s134 + $0xe0] sm:$0xff]
        %v247 = vmul.f32 %v246, %v246
        %v248 = vadd.f32 %v245, %v247
        %v249 = vld [vmem:[%s134 + $0xe8] sm:$0xff]
        %v250 = vmul.f32 %v249, %v249
        %v251 = vadd.f32 %v248, %v250
        %v252 = vld [vmem:[%s134 + $0xf0] sm:$0xff]
        %v253 = vmul.f32 %v252, %v252
        %v254 = vadd.f32 %v251, %v253
        %v255 = vld [vmem:[%s134 + $0xf8] sm:$0xff]
        %v256 = vmul.f32 %v255, %v255
        %v257 = vadd.f32 %v254, %v256
        %v258 = vld [vmem:[%s134 + $0x100] sm:$0xff]
        %v259 = vmul.f32 %v258, %v258
        %v260 = vadd.f32 %v257, %v259
        %v261 = vld [vmem:[%s134 + $0x108] sm:$0xff]
        %v262 = vmul.f32 %v261, %v261
        %v263 = vadd.f32 %v260, %v262
        %v264 = vld [vmem:[%s134 + $0x110] sm:$0xff]
        %v265 = vmul.f32 %v264, %v264
        %v266 = vadd.f32 %v263, %v265
        %v267 = vld [vmem:[%s134 + $0x118] sm:$0xff]
        %v268 = vmul.f32 %v267, %v267
        %v269 = vadd.f32 %v266, %v268
        %v270 = vld [vmem:[%s134 + $0x120] sm:$0xff]
        %v271 = vmul.f32 %v270, %v270
        %v272 = vadd.f32 %v269, %v271
        %v273 = vld [vmem:[%s134 + $0x128] sm:$0xff]
        %v274 = vmul.f32 %v273, %v273
        %v275 = vadd.f32 %v272, %v274
        %v276 = vld [vmem:[%s134 + $0x130] sm:$0xff]
        %v277 = vmul.f32 %v276, %v276
        %v278 = vadd.f32 %v275, %v277
        %v279 = vld [vmem:[%s134 + $0x138] sm:$0xff]
        %v280 = vmul.f32 %v279, %v279
        %v281 = vadd.f32 %v278, %v280
        %v282 = vld [vmem:[%s134 + $0x140] sm:$0xff]
        %v283 = vmul.f32 %v282, %v282
        %v284 = vadd.f32 %v281, %v283
        %v285 = vld [vmem:[%s134 + $0x148] sm:$0xff]
        %v286 = vmul.f32 %v285, %v285
        %v287 = vadd.f32 %v284, %v286
        %v288 = vld [vmem:[%s134 + $0x150] sm:$0xff]
        %v289 = vmul.f32 %v288, %v288
        %v290 = vadd.f32 %v287, %v289
        %v291 = vld [vmem:[%s134 + $0x158] sm:$0xff]
        %v292 = vmul.f32 %v291, %v291
        %v293 = vadd.f32 %v290, %v292
        %v294 = vld [vmem:[%s134 + $0x160] sm:$0xff]
        %v295 = vmul.f32 %v294, %v294
        %v296 = vadd.f32 %v293, %v295
        %v297 = vld [vmem:[%s134 + $0x168] sm:$0xff]
        %v298 = vmul.f32 %v297, %v297
        %v299 = vadd.f32 %v296, %v298
        %v300 = vld [vmem:[%s134 + $0x170] sm:$0xff]
        %v301 = vmul.f32 %v300, %v300
        %v302 = vadd.f32 %v299, %v301
        %v303 = vld [vmem:[%s134 + $0x178] sm:$0xff]
        %v304 = vmul.f32 %v303, %v303
        %v305 = vadd.f32 %v302, %v304
        %v306 = vld [vmem:[%s134 + $0x180] sm:$0xff]
        %v307 = vmul.f32 %v306, %v306
        %v308 = vadd.f32 %v305, %v307
        %v309 = vld [vmem:[%s134 + $0x188] sm:$0xff]
        %v310 = vmul.f32 %v309, %v309
        %v311 = vadd.f32 %v308, %v310
        %v312 = vld [vmem:[%s134 + $0x190] sm:$0xff]
        %v313 = vmul.f32 %v312, %v312
        %v314 = vadd.f32 %v311, %v313
        %v315 = vld [vmem:[%s134 + $0x198] sm:$0xff]
        %v316 = vmul.f32 %v315, %v315
        %v317 = vadd.f32 %v314, %v316
        %v318 = vld [vmem:[%s134 + $0x1a0] sm:$0xff]
        %v319 = vmul.f32 %v318, %v318
        %v320 = vadd.f32 %v317, %v319
        %v321 = vld [vmem:[%s134 + $0x1a8] sm:$0xff]
        %v322 = vmul.f32 %v321, %v321
        %v323 = vadd.f32 %v320, %v322
        %v324 = vld [vmem:[%s134 + $0x1b0] sm:$0xff]
        %v325 = vmul.f32 %v324, %v324
        %v326 = vadd.f32 %v323, %v325
        %v327 = vld [vmem:[%s134 + $0x1b8] sm:$0xff]
        %v328 = vmul.f32 %v327, %v327
        %v329 = vadd.f32 %v326, %v328
        %v330 = vld [vmem:[%s134 + $0x1c0] sm:$0xff]
        %v331 = vmul.f32 %v330, %v330
        %v332 = vadd.f32 %v329, %v331
        %v333 = vld [vmem:[%s134 + $0x1c8] sm:$0xff]
        %v334 = vmul.f32 %v333, %v333
        %v335 = vadd.f32 %v332, %v334
        %v336 = vld [vmem:[%s134 + $0x1d0] sm:$0xff]
        %v337 = vmul.f32 %v336, %v336
        %v338 = vadd.f32 %v335, %v337
        %v339 = vld [vmem:[%s134 + $0x1d8] sm:$0xff]
        %v340 = vmul.f32 %v339, %v339
        %v341 = vadd.f32 %v338, %v340
        %v342 = vld [vmem:[%s134 + $0x1e0] sm:$0xff]
        %v343 = vmul.f32 %v342, %v342
        %v344 = vadd.f32 %v341, %v343
        %v345 = vld [vmem:[%s134 + $0x1e8] sm:$0xff]
        %v346 = vmul.f32 %v345, %v345
        %v347 = vadd.f32 %v344, %v346
        %v348 = vld [vmem:[%s134 + $0x1f0] sm:$0xff]
        %v349 = vmul.f32 %v348, %v348
        %v350 = vadd.f32 %v347, %v349
        %v351 = vld [vmem:[%s134 + $0x1f8] sm:$0xff]
        %v352 = vmul.f32 %v351, %v351
        %v353 = vadd.f32 %v350, %v352
        %v354 = vld [vmem:[%s153] sm:$0xff]
        %v355 = vadd.f32 %v354, %v353
        %356 = vst [vmem:[%s153] sm:$0xff] %v355
        %s357 = sand.u32 %s69, 1
        %s358 = scalar_lea.sflag [#allocation7], %s357
        %s359 = sand.u32 %s69, 1
        %s360 = smul.addr %s359, 8
        %s361 = scalar_lea.vmem [#allocation8], %s360
        // Predicated region
        $region33: #{tpu_custom_call.1} parent=23 // pred_check
          %p362 = pneg %p79
        $region34: #{tpu_custom_call.1} parent=23 // pred_check_branch
          %364 = sbr.rel (%p362) target = $region36
        $region35: #{tpu_custom_call.1} parent=23 // pred_region
          %s365 = sld [smem:[#allocation3 + %s33]]
          %367 = vsyncadd %s358, 0
          %s368 = smul.addr %s365, 8
          %s369 = scalar_lea.hbm %s3, %s368
          %s371 = sshll.u32 %s361, 4
          %s372 = int_to_ptr.vmem [resolvable:$true] %s371
          %s373 = sshll.u32 %s369, 4
          %s374 = int_to_ptr.hbm [resolvable:$true] %s373
          %376 = dma.vmem_to_hbm [thread:$0]  %s372, 128, %s374, %s358
        $region36: #{tpu_custom_call.1} parent=23 // pred_fallthru
          _
      $region24: #{tpu_custom_call.1} parent=5 // pred_fallthru
        _
      %p377 = scmp.le.s32.totalorder 2, %s28
      // Predicated region
      $region37: #{tpu_custom_call.1} parent=5 // pred_check
        %p378 = pneg %p377
      $region38: #{tpu_custom_call.1} parent=5 // pred_check_branch
        %380 = sbr.rel (%p378) target = $region40
      $region39: #{tpu_custom_call.1} parent=5 // pred_region
        %s381 = ssub.s32 %s28, 2
        // Predicated region
        $region41: #{tpu_custom_call.1} parent=39 // pred_check
          %p382 = pneg %p85
        $region42: #{tpu_custom_call.1} parent=39 // pred_check_branch
          %384 = sbr.rel (%p382) target = $region44
        $region43: #{tpu_custom_call.1} parent=39 // pred_region
          %s385 = sand.u32 %s70, 1
          %s386 = scalar_lea.sflag [#allocation7], %s385
          %s387 = sand.u32 %s70, 1
          %s388 = smul.addr %s387, 8
          %s389 = scalar_lea.vmem [#allocation8], %s388
          %391 = dma.done %s386, 128
        $region44: #{tpu_custom_call.1} parent=39 // pred_fallthru
          _
      $region40: #{tpu_custom_call.1} parent=5 // pred_fallthru
        _
    $region6: #{tpu_custom_call.1} parent=1 // loop_footer
      %s32 = sadd.s32 1, %s28
    $region7: #{tpu_custom_call.1} parent=1 // loop_footer_branch
      %27 = sbr.rel target = $region3
    $region8: #{tpu_custom_call.1} parent=1 // loop_exit
      _
    %392 = vsyncpa [#allocation6], 1
    %s393 = scalar_lea.sflag [#allocation6], 1
    %394 = vsyncpa %s393, 1
    %395 = vsyncpa [#allocation7], 1
    %s396 = scalar_lea.sflag [#allocation7], 1
    %397 = vsyncpa %s396, 1

</llo_original>
